<compile_context>
chip_gen: v7x
topology: tpu7x:2x2x1
jax: 0.10.0
libtpu: 0.0.40
codegen_flags: <defaults>
</compile_context>

<pallas_src>
import functools

import jax
import jax.numpy as jnp
from jax.experimental import pallas as pl
from jax.experimental.pallas import tpu as pltpu


# ---------------------------------------------------------------------------
# Kernels
# ---------------------------------------------------------------------------
def _bn_fused_kernel(x_ref, gamma_ref, beta_ref, o_ref, *, eps, inv_count):
    """Fused stats + normalize + affine for one channel tile.

    x_ref: (N, tc, HWp)   gamma_ref / beta_ref: (tc, 1)   o_ref: (N, tc, HWp)
    Zero padding in the HW axis (if any) contributes nothing to the sums;
    `inv_count` is 1 / (N * H * W) of the *real* element count.
    """
    x = x_ref[...].astype(jnp.float32)

    # One-pass sum / sum-of-squares in f32.  Inputs are conv activations with
    # moderate magnitude, and accumulation stays in f32, so E[x^2] - mean^2
    # remains well-behaved (clamped at 0 for safety).
    # Reduce over the leading N axis first (plain VPU adds); only the
    # N-times-smaller array goes through the XLU cross-lane reduce.
    s_hw = jnp.sum(x, axis=0)                        # (tc, HWp)  VPU
    q_hw = jnp.sum(x * x, axis=0)                    # (tc, HWp)  VPU
    s = jnp.sum(s_hw, axis=-1, keepdims=True)        # (tc, 1)    XLU
    q = jnp.sum(q_hw, axis=-1, keepdims=True)        # (tc, 1)    XLU

    mean = s * inv_count
    var = jnp.maximum(q * inv_count - mean * mean, 0.0)   # biased (PyTorch train)
    inv = jax.lax.rsqrt(var + eps)                         # EUP, f32

    scale = inv * gamma_ref[...].astype(jnp.float32)       # (tc, 1)
    shift = beta_ref[...].astype(jnp.float32) - mean * scale

    # Single full-tile mul + add; no long-lived full-tile f32 temporary.
    o_ref[...] = (x * scale[None] + shift[None]).astype(o_ref.dtype)


def _bn_stats_kernel(x_ref, sum_ref, sq_ref):
    """Accumulate per-channel sum / sum-of-squares across HW chunks.

    Grid: (channel_tiles, hw_chunks).  The hw axis is a reduction axis, so the
    (tc, 1) outputs stay resident in VMEM and are initialized at chunk 0.
    """
    @pl.when(pl.program_id(1) == 0)
    def _():
        sum_ref[...] = jnp.zeros_like(sum_ref)
        sq_ref[...] = jnp.zeros_like(sq_ref)

    x = x_ref[...].astype(jnp.float32)               # (N, tc, thw)
    s_hw = jnp.sum(x, axis=0)                        # (tc, thw)  VPU
    q_hw = jnp.sum(x * x, axis=0)                    # (tc, thw)  VPU
    sum_ref[...] += jnp.sum(s_hw, axis=-1, keepdims=True)   # XLU
    sq_ref[...] += jnp.sum(q_hw, axis=-1, keepdims=True)    # XLU


def _bn_affine_kernel(x_ref, scale_ref, shift_ref, o_ref):
    """y = x * scale + shift with per-channel scale / shift (tc, 1)."""
    x = x_ref[...].astype(jnp.float32)
    o_ref[...] = (x * scale_ref[...][None] + shift_ref[...][None]).astype(o_ref.dtype)


# ---------------------------------------------------------------------------
# Generation-aware sizing helpers
# ---------------------------------------------------------------------------
def _round_up(v, m):
    return -(-v // m) * m


def _tpu_vmem_capacity_bytes():
    try:
        info = pltpu.get_tpu_info()
        cap = getattr(info, "vmem_capacity_bytes", None)
        if cap:
            return int(cap)
    except Exception:
        pass
    try:
        kind = jax.devices()[0].device_kind.lower()
        if "v7" in kind or "7x" in kind:
            return 64 << 20
    except Exception:
        pass
    return 128 << 20


def _num_tensorcores():
    try:
        info = pltpu.get_tpu_info()
        for attr in ("num_tensorcores", "tensorcore_count", "num_cores", "core_count"):
            v = getattr(info, attr, None)
            if v:
                return int(v)
    except Exception:
        pass
    try:
        kind = jax.devices()[0].device_kind.lower()
        if "v7" in kind or "7x" in kind:
            return 2
    except Exception:
        pass
    return 1


def _vmem_budget_and_cap(capacity_bytes):
    """(working-set budget, hard cap for vmem_limit_bytes) per generation."""
    if capacity_bytes <= (64 << 20):        # v7x-class: 64 MiB physical per TC
        return 24 << 20, 52 << 20
    return 48 << 20, 96 << 20               # v5e / v6e: 128 MiB physical


def _block_footprint_bytes(n, tc, thw, itemsize):
    # Double-buffered input + output blocks, plus ~2 full-tile f32 temporaries
    # (the f32 upcast of x and the pre-cast result).
    return n * tc * thw * (2 * 2 * itemsize + 2 * 4)


def _divisor_tiles(dim, unit):
    """Valid tile sizes for `dim`: the full dim, or divisors that are
    multiples of `unit` (TPU (8,128) block constraint).  Descending order."""
    tiles = {dim}
    t = unit
    while t < dim:
        if dim % t == 0:
            tiles.add(t)
        t += unit
    return sorted(tiles, reverse=True)


def _select_fused_channel_tile(n, c, hwp, itemsize, budget, prefer_multi_step):
    fits = [t for t in _divisor_tiles(c, 8)
            if _block_footprint_bytes(n, t, hwp, itemsize) <= budget]
    if not fits:
        return None
    if prefer_multi_step:
        multi = [t for t in fits if c // t >= 2]
        if multi:
            return multi[0]   # largest fitting tile that still gives >= 2 grid steps
    return fits[0]


def _select_split_tiles(n, c, hwp, itemsize, budget):
    c_tiles = _divisor_tiles(c, 8)
    hw_tiles = _divisor_tiles(hwp, 128)
    best = None
    for tc in c_tiles:
        for thw in hw_tiles:             # descending: first fit is largest per tc
            if _block_footprint_bytes(n, tc, thw, itemsize) <= budget:
                if best is None or tc * thw > best[0] * best[1]:
                    best = (tc, thw)
                break
    if best is None:
        # TODO(synk): also chunk the batch axis for extremely large N; for now
        # fall back to the smallest lane-dense block.
        best = (c_tiles[-1], hw_tiles[-1])
    return best


# ---------------------------------------------------------------------------
# Wrapper
# ---------------------------------------------------------------------------
def batch_norm_layer_forward(x_nchw, gamma, beta, *, eps=1e-5,
                             channel_tile=None, vmem_budget_bytes=None):
    """Training-mode BatchNorm2d forward.  x_nchw: (N, C, H, W)."""
    n, c, h, w = x_nchw.shape
    hw = h * w
    itemsize = jnp.dtype(x_nchw.dtype).itemsize
    inv_count = 1.0 / float(n * hw)

    # Lane-density guard: pad HW up to a multiple of 128.  Zeros do not
    # perturb the sums; inv_count uses the real count; padded columns are
    # sliced off at the end.
    hwp = _round_up(hw, 128)
    x3 = x_nchw.reshape(n, c, hw)                      # free contiguous reshape
    if hwp != hw:
        x3 = jnp.pad(x3, ((0, 0), (0, 0), (0, hwp - hw)))

    gamma2 = jnp.reshape(gamma, (c, 1)).astype(jnp.float32)
    beta2 = jnp.reshape(beta, (c, 1)).astype(jnp.float32)

    capacity = _tpu_vmem_capacity_bytes()
    budget, limit_cap = _vmem_budget_and_cap(capacity)
    if vmem_budget_bytes is not None:
        budget = int(vmem_budget_bytes)
    prefer_multi = _num_tensorcores() > 1

    if channel_tile is not None:
        tc = int(channel_tile)
        assert c % tc == 0 and (tc == c or tc % 8 == 0), "bad channel tile"
    else:
        tc = _select_fused_channel_tile(n, c, hwp, itemsize, budget, prefer_multi)

    if tc is not None:
        # ------------------ fused single-kernel path ------------------
        footprint = _block_footprint_bytes(n, tc, hwp, itemsize)
        vmem_limit = int(min(limit_cap, max(32 << 20, footprint + (12 << 20))))
        kernel = functools.partial(_bn_fused_kernel, eps=float(eps),
                                   inv_count=inv_count)
        cost = pl.CostEstimate(
            flops=int(5 * n * c * hw),
            transcendentals=int(c),
            bytes_accessed=int(2 * n * c * hwp * itemsize + 2 * c * 4),
        )
        out = pl.pallas_call(
            kernel,
            out_shape=jax.ShapeDtypeStruct((n, c, hwp), x_nchw.dtype),
            grid_spec=pltpu.PrefetchScalarGridSpec(
                num_scalar_prefetch=0,
                grid=(c // tc,),
                in_specs=[
                    pl.BlockSpec((n, tc, hwp), lambda ci: (0, ci, 0)),
                    pl.BlockSpec((tc, 1), lambda ci: (ci, 0)),
                    pl.BlockSpec((tc, 1), lambda ci: (ci, 0)),
                ],
                out_specs=pl.BlockSpec((n, tc, hwp), lambda ci: (0, ci, 0)),
            ),
            compiler_params=pltpu.CompilerParams(
                dimension_semantics=("parallel",),   # channels independent -> megacore
                vmem_limit_bytes=vmem_limit,
            ),
            cost_estimate=cost,
        )(x3, gamma2, beta2)
    else:
        # ------------- two-kernel fallback (huge N*H*W per channel) -------------
        tc, thw = _select_split_tiles(n, c, hwp, itemsize, budget)
        footprint = _block_footprint_bytes(n, tc, thw, itemsize)
        vmem_limit = int(min(limit_cap, max(32 << 20, footprint + (12 << 20))))

        stats_cost = pl.CostEstimate(
            flops=int(3 * n * c * hw), transcendentals=0,
            bytes_accessed=int(n * c * hwp * itemsize + 2 * c * 4))
        s, q = pl.pallas_call(
            _bn_stats_kernel,
            out_shape=(jax.ShapeDtypeStruct((c, 1), jnp.float32),
                       jax.ShapeDtypeStruct((c, 1), jnp.float32)),
            grid_spec=pltpu.PrefetchScalarGridSpec(
                num_scalar_prefetch=0,
                grid=(c // tc, hwp // thw),
                in_specs=[pl.BlockSpec((n, tc, thw), lambda ci, hj: (0, ci, hj))],
                out_specs=(pl.BlockSpec((tc, 1), lambda ci, hj: (ci, 0)),
                           pl.BlockSpec((tc, 1), lambda ci, hj: (ci, 0))),
            ),
            compiler_params=pltpu.CompilerParams(
                dimension_semantics=("parallel", "arbitrary"),
                vmem_limit_bytes=vmem_limit,
            ),
            cost_estimate=stats_cost,
        )(x3)

        # Tiny per-channel math (C scalars) stays in plain JAX.
        mean = s * inv_count
        var = jnp.maximum(q * inv_count - mean * mean, 0.0)
        inv = jax.lax.rsqrt(var + float(eps))
        scale = (gamma2 * inv).astype(jnp.float32)
        shift = (beta2 - mean * scale).astype(jnp.float32)

        affine_cost = pl.CostEstimate(
            flops=int(2 * n * c * hw), transcendentals=0,
            bytes_accessed=int(2 * n * c * hwp * itemsize + 2 * c * 4))
        out = pl.pallas_call(
            _bn_affine_kernel,
            out_shape=jax.ShapeDtypeStruct((n, c, hwp), x_nchw.dtype),
            grid_spec=pltpu.PrefetchScalarGridSpec(
                num_scalar_prefetch=0,
                grid=(c // tc, hwp // thw),
                in_specs=[
                    pl.BlockSpec((n, tc, thw), lambda ci, hj: (0, ci, hj)),
                    pl.BlockSpec((tc, 1), lambda ci, hj: (ci, 0)),
                    pl.BlockSpec((tc, 1), lambda ci, hj: (ci, 0)),
                ],
                out_specs=pl.BlockSpec((n, tc, thw), lambda ci, hj: (0, ci, hj)),
            ),
            compiler_params=pltpu.CompilerParams(
                dimension_semantics=("parallel", "parallel"),
                vmem_limit_bytes=vmem_limit,
            ),
            cost_estimate=affine_cost,
        )(x3, scale, shift)

    if hwp != hw:
        out = out[:, :, :hw]
    return out.reshape(n, c, h, w)


# ---------------------------------------------------------------------------
# Main
# ---------------------------------------------------------------------------
if __name__ == "__main__":
    key = jax.random.PRNGKey(0)
    k_x, k_g, k_b, k_x2, k_x3 = jax.random.split(key, 5)
    eps = 1e-5

    def ref_bn(x, gamma, beta):
        xr = x.astype(jnp.float32)
        mean = xr.mean(axis=(0, 2, 3), keepdims=True)
        var = ((xr - mean) ** 2).mean(axis=(0, 2, 3), keepdims=True)
        y = (xr - mean) / jnp.sqrt(var + eps)
        c = x.shape[1]
        return y * gamma.reshape(1, c, 1, 1) + beta.reshape(1, c, 1, 1)

    # 1) Small NCHW case, fused single-kernel path (grid = 1).
    N, C, H, W = 2, 4, 16, 16
    x = jax.random.normal(k_x, (N, C, H, W), dtype=jnp.float32)
    gamma = 1.0 + 0.1 * jax.random.normal(k_g, (C,), dtype=jnp.float32)
    beta = 0.1 * jax.random.normal(k_b, (C,), dtype=jnp.float32)
    out = jax.block_until_ready(batch_norm_layer_forward(x, gamma, beta, eps=eps))
    assert out.shape == (N, C, H, W)
    assert jnp.allclose(out, ref_bn(x, gamma, beta), atol=1e-4, rtol=1e-4)

    # 2) Channel-tiled fused path (grid > 1).
    C2 = 32
    x2 = jax.random.normal(k_x2, (N, C2, H, W), dtype=jnp.float32)
    g2 = jnp.ones((C2,), dtype=jnp.float32)
    b2 = jnp.zeros((C2,), dtype=jnp.float32)
    out2 = jax.block_until_ready(
        batch_norm_layer_forward(x2, g2, b2, eps=eps, channel_tile=8))
    assert jnp.allclose(out2, ref_bn(x2, g2, b2), atol=1e-4, rtol=1e-4)

    # 3) Tiny forced budget -> exercises the two-kernel (stats + affine)
    #    fallback path with HW chunking and scratch-free output accumulators.
    out3 = jax.block_until_ready(
        batch_norm_layer_forward(x2, g2, b2, eps=eps, vmem_budget_bytes=1 << 14))
    assert jnp.allclose(out3, ref_bn(x2, g2, b2), atol=1e-4, rtol=1e-4)

    # 4) Non-multiple-of-128 spatial size (7x7) -> lane-density padding guard.
    x4 = jax.random.normal(k_x3, (2, 8, 7, 7), dtype=jnp.float32)
    g4 = 1.0 + 0.05 * jnp.arange(8, dtype=jnp.float32)
    b4 = 0.02 * jnp.arange(8, dtype=jnp.float32)
    out4 = jax.block_until_ready(batch_norm_layer_forward(x4, g4, b4, eps=eps))
    assert jnp.allclose(out4, ref_bn(x4, g4, b4), atol=1e-4, rtol=1e-4)

    print("KERNEL_OK")
</pallas_src>

<mosaic_0001>
module attributes {stable_mosaic.version = 11 : i64} {
  func.func @_bn_fused_kernel(%arg0: i32, %arg1: memref<2x4x256xf32, #tpu.memory_space<vmem>>, %arg2: memref<4x1xf32, #tpu.memory_space<vmem>>, %arg3: memref<4x1xf32, #tpu.memory_space<vmem>>, %arg4: memref<2x4x256xf32, #tpu.memory_space<vmem>>) attributes {dimension_semantics = [#tpu.dimension_semantics<parallel>], iteration_bounds = array<i64: 1>, scalar_prefetch = 0 : i64, scratch_operands = 0 : i64, tpu.core_type = #tpu.core_type<tc>, window_params = [{transform_indices = @transform_0, window_bounds = array<i64: 2, 4, 256>}, {transform_indices = @transform_1, window_bounds = array<i64: 4, 1>}, {transform_indices = @transform_2, window_bounds = array<i64: 4, 1>}, {transform_indices = @transform_3, window_bounds = array<i64: 2, 4, 256>}]} {
    %c0 = arith.constant 0 : index
    %c0_0 = arith.constant 0 : index
    %c0_1 = arith.constant 0 : index
    %0 = vector.load %arg1[%c0, %c0_0, %c0_1] : memref<2x4x256xf32, #tpu.memory_space<vmem>>, vector<2x4x256xf32>
    %cst = arith.constant dense<0.000000e+00> : vector<4x256xf32>
    %1 = vector.multi_reduction <add>, %0, %cst [0] : vector<2x4x256xf32> to vector<4x256xf32>
    %2 = arith.mulf %0, %0 : vector<2x4x256xf32>
    %cst_2 = arith.constant dense<0.000000e+00> : vector<4x256xf32>
    %3 = vector.multi_reduction <add>, %2, %cst_2 [0] : vector<2x4x256xf32> to vector<4x256xf32>
    %cst_3 = arith.constant dense<0.000000e+00> : vector<4xf32>
    %4 = vector.multi_reduction <add>, %1, %cst_3 [1] : vector<4x256xf32> to vector<4xf32>
    %5 = vector.shape_cast %4 : vector<4xf32> to vector<4x1xf32>
    %cst_4 = arith.constant dense<0.000000e+00> : vector<4xf32>
    %6 = vector.multi_reduction <add>, %3, %cst_4 [1] : vector<4x256xf32> to vector<4xf32>
    %7 = vector.shape_cast %6 : vector<4xf32> to vector<4x1xf32>
    %cst_5 = arith.constant 0.001953125 : f32
    %8 = vector.broadcast %cst_5 : f32 to vector<4x1xf32>
    %9 = arith.mulf %5, %8 : vector<4x1xf32>
    %cst_6 = arith.constant 0.001953125 : f32
    %10 = vector.broadcast %cst_6 : f32 to vector<4x1xf32>
    %11 = arith.mulf %7, %10 : vector<4x1xf32>
    %12 = arith.mulf %9, %9 : vector<4x1xf32>
    %13 = arith.subf %11, %12 : vector<4x1xf32>
    %cst_7 = arith.constant 0.000000e+00 : f32
    %14 = vector.broadcast %cst_7 : f32 to vector<4x1xf32>
    %15 = arith.maximumf %13, %14 : vector<4x1xf32>
    %cst_8 = arith.constant 9.99999974E-6 : f32
    %16 = vector.broadcast %cst_8 : f32 to vector<4x1xf32>
    %17 = arith.addf %15, %16 : vector<4x1xf32>
    %18 = math.rsqrt %17 : vector<4x1xf32>
    %c0_9 = arith.constant 0 : index
    %c0_10 = arith.constant 0 : index
    %19 = vector.load %arg2[%c0_9, %c0_10] : memref<4x1xf32, #tpu.memory_space<vmem>>, vector<4x1xf32>
    %20 = arith.mulf %18, %19 : vector<4x1xf32>
    %c0_11 = arith.constant 0 : index
    %c0_12 = arith.constant 0 : index
    %21 = vector.load %arg3[%c0_11, %c0_12] : memref<4x1xf32, #tpu.memory_space<vmem>>, vector<4x1xf32>
    %22 = arith.mulf %9, %20 : vector<4x1xf32>
    %23 = arith.subf %21, %22 : vector<4x1xf32>
    %24 = vector.shape_cast %20 : vector<4x1xf32> to vector<1x4x1xf32>
    %25 = vector.broadcast %24 : vector<1x4x1xf32> to vector<2x4x256xf32>
    %26 = arith.mulf %0, %25 : vector<2x4x256xf32>
    %27 = vector.shape_cast %23 : vector<4x1xf32> to vector<1x4x1xf32>
    %28 = vector.broadcast %27 : vector<1x4x1xf32> to vector<2x4x256xf32>
    %29 = arith.addf %26, %28 : vector<2x4x256xf32>
    %c0_13 = arith.constant 0 : index
    %c0_14 = arith.constant 0 : index
    %c0_15 = arith.constant 0 : index
    %30 = vector.load %arg4[%c0_13, %c0_14, %c0_15] : memref<2x4x256xf32, #tpu.memory_space<vmem>>, vector<2x4x256xf32>
    tpu.vector_store %arg4[%c0_13, %c0_14, %c0_15], %29 {strides = array<i32>} : memref<2x4x256xf32, #tpu.memory_space<vmem>>, vector<2x4x256xf32>,
    return
  }
  func.func @transform_0(%arg0: i32) -> (i32, i32, i32) {
    %c0_i32 = arith.constant 0 : i32
    %c0_i32_0 = arith.constant 0 : i32
    %c0_i32_1 = arith.constant 0 : i32
    return %c0_i32, %arg0, %c0_i32_0 : i32, i32, i32
  }
  func.func @transform_1(%arg0: i32) -> (i32, i32) {
    %c0_i32 = arith.constant 0 : i32
    %c0_i32_0 = arith.constant 0 : i32
    return %arg0, %c0_i32 : i32, i32
  }
  func.func @transform_2(%arg0: i32) -> (i32, i32) {
    %c0_i32 = arith.constant 0 : i32
    %c0_i32_0 = arith.constant 0 : i32
    return %arg0, %c0_i32 : i32, i32
  }
  func.func @transform_3(%arg0: i32) -> (i32, i32, i32) {
    %c0_i32 = arith.constant 0 : i32
    %c0_i32_0 = arith.constant 0 : i32
    %c0_i32_1 = arith.constant 0 : i32
    return %c0_i32, %arg0, %c0_i32_0 : i32, i32, i32
  }
}

</mosaic_0001>

<llo_original>
// kernel: tpu_custom_call.1
$region0: #{tpu_custom_call.1}
  #allocation0 [shape = 'u32[]', space=smem, size = 0x4, offset = 0x4, fixed_abs, tag = 'smem constant byte address 0x4 - core index']
  #allocation1 [shape = 'u32[144,128]{1,0:T(1,128)}', space=vmem, size = 0x12000, scoped, tag = 'internal scratch']
  %s0 = inlined_call_operand.hbm [shape: f32[2,4,256], index: 0, kind: input, shape index: {}]
  %s1 = inlined_call_operand.vmem [shape: f32[4,1], index: 1, kind: input, shape index: {}]
  %s2 = inlined_call_operand.vmem [shape: f32[4,1], index: 2, kind: input, shape index: {}]
  %s3 = inlined_call_operand.hbm [shape: f32[2,4,256], index: 3, kind: output, shape index: {}]
  %s4 = sld [smem:[#allocation0]]
  $region26: #{tpu_custom_call.1} parent=0
    _
  %s6 = ssub.s32 1, %s4
  %s7 = scalar_select 0, %s6, %s4
  $region1: #{tpu_custom_call.1} parent=0
    #allocation2 [shape = 'u8[8192]{0}', space=vmem, size = 0x2000, scoped, tag = 'input window, operand 0, single buffered']
    #allocation3 [shape = 's32[1]{0}', space=sflag, size = 0x4, scoped, tag = 'scoped memory for tpu_custom_call.1']
    #allocation4 [shape = 's32[1]{0}', space=sflag, size = 0x4, scoped, tag = 'scoped memory for tpu_custom_call.1']
    #allocation5 [shape = 'u8[8192]{0}', space=vmem, size = 0x2000, scoped, tag = 'output window, operand 0, single buffered']
    %8 = vsyncpa [#allocation3], 0
    %9 = vsyncpa [#allocation4], 0
    // Predicated region
    $region2: #{tpu_custom_call.1} parent=1 // pred_check
      _
    $region3: #{tpu_custom_call.1} parent=1 // pred_check_branch
      %11 = sbr.rel (0) target = $region5
    $region4: #{tpu_custom_call.1} parent=1 // pred_region
      %s13 = ssub.s32 256, 256
      %14 = vsyncadd [#allocation3], %s13
      %s15 = sshll.u32 [#allocation2], 4
      %s16 = int_to_ptr.vmem [resolvable:$true] %s15
      %21 = dma.hbm_to_vmem [thread:$0]  %s0, 256, %s16, [#allocation3], 128, 128, 8
    $region5: #{tpu_custom_call.1} parent=1 // pred_fallthru
      _
    // Predicated region
    $region6: #{tpu_custom_call.1} parent=1 // pred_check
      _
    $region7: #{tpu_custom_call.1} parent=1 // pred_check_branch
      %23 = sbr.rel (0) target = $region9
    $region8: #{tpu_custom_call.1} parent=1 // pred_region
      _
    $region9: #{tpu_custom_call.1} parent=1 // pred_fallthru
      _
    // Predicated region
    $region10: #{tpu_custom_call.1} parent=1 // pred_check
      _
    $region11: #{tpu_custom_call.1} parent=1 // pred_check_branch
      %25 = sbr.rel (0) target = $region13
    $region12: #{tpu_custom_call.1} parent=1 // pred_region
      _
    $region13: #{tpu_custom_call.1} parent=1 // pred_fallthru
      _
    // Predicated region
    $region14: #{tpu_custom_call.1} parent=1 // pred_check
      _
    $region15: #{tpu_custom_call.1} parent=1 // pred_check_branch
      %27 = sbr.rel (0) target = $region17
    $region16: #{tpu_custom_call.1} parent=1 // pred_region
      %28 = dma.done [#allocation3], 256
    $region17: #{tpu_custom_call.1} parent=1 // pred_fallthru
      _
    %v29 = vld [vmem:[#allocation2] sm:$0xff]
    %v30 = vld [vmem:[#allocation2 + $0x8] sm:$0xff]
    %v33 = vcombine.high %v29, %v29
    %v34 = vcombine.high %v30, %v30
    %vm37 = vcmask 1043456
    %v38 = vsel %vm37, %v29, 0.0
    %v39 = vsel %vm37, %v30, 0.0
    %v40 = vadd.f32 %v38, %v39
    %v41 = vsel %vm37, %v33, 0.0
    %v42 = vsel %vm37, %v34, 0.0
    %v43 = vadd.f32 %v41, %v42
    %v44 = vmul.f32 %v29, %v29
    %v45 = vmul.f32 %v30, %v30
    %v48 = vcombine.high %v44, %v44
    %v49 = vcombine.high %v45, %v45
    %v52 = vsel %vm37, %v44, 0.0
    %v53 = vsel %vm37, %v45, 0.0
    %v54 = vadd.f32 %v52, %v53
    %v55 = vsel %vm37, %v48, 0.0
    %v56 = vsel %vm37, %v49, 0.0
    %v57 = vadd.f32 %v55, %v56
    %v58 = vsel %vm37, %v40, 0.0
    %v59 = vsel %vm37, %v43, 0.0
    %v60 = vadd.f32 %v58, %v59
    %61 = vadd.xlane.f32.xlu0 %v60
    %v62 = vpop.xlane.xlu0 %61
    %v63 = vsel %vm37, %v54, 0.0
    %v64 = vsel %vm37, %v57, 0.0
    %v65 = vadd.f32 %v63, %v64
    %66 = vadd.xlane.f32.xlu0 %v65
    %v67 = vpop.xlane.xlu0 %66
    %v68 = vmul.f32 %v62, 0.001953125
    %v69 = vmul.f32 %v67, 0.001953125
    %v70 = vmul.f32 %v68, %v68
    %v71 = vsub.f32 %v69, %v70
    %v72 = vmax.f32 %v71, 0.0
    %v73 = vadd.f32 %v72, 1e-05
    %v74 = vrsqrt.pop %v73
    %v75 = vld [vmem:[%s1] sm:$0xf]
    %v76 = vmul.f32 %v74, %v75
    %v77 = vld [vmem:[%s2] sm:$0xf]
    %v78 = vmul.f32 %v68, %v76
    %v79 = vsub.f32 %v77, %v78
    %81 = vset.pattern.permute.xlu0 0
    %82 = vperm.xlu0 %81, %v76
    %v83 = vpop.permute.xlu0 %82
    %v85 = vunpack.c.l.s4 839922192
    %v86 = vunpack.c.0.s8 %v85
    %v87 = vlaneseq
    %v88 = vshrl.u32 %v87, 7
    %v89 = vsub.s32 %v86, %v88
    %v90 = vrot.slane %v83, %v89
    %v92 = vmul.f32 %v29, %v90
    %v93 = vmul.f32 %v30, %v90
    %95 = vset.pattern.permute.xlu0 0
    %96 = vperm.xlu0 %95, %v79
    %v97 = vpop.permute.xlu0 %96
    %v99 = vunpack.c.l.s4 839922192
    %v100 = vunpack.c.0.s8 %v99
    %v101 = vlaneseq
    %v102 = vshrl.u32 %v101, 7
    %v103 = vsub.s32 %v100, %v102
    %v104 = vrot.slane %v97, %v103
    %v106 = vadd.f32 %v92, %v104
    %v107 = vadd.f32 %v93, %v104
    %108 = vst [vmem:[#allocation5] sm:$0xff] %v106
    %109 = vst [vmem:[#allocation5 + $0x8] sm:$0xff] %v107
    // Predicated region
    $region18: #{tpu_custom_call.1} parent=1 // pred_check
      _
    $region19: #{tpu_custom_call.1} parent=1 // pred_check_branch
      %111 = sbr.rel (0) target = $region21
    $region20: #{tpu_custom_call.1} parent=1 // pred_region
      %s113 = ssub.s32 256, 256
      %114 = vsyncadd [#allocation4], %s113
      %s115 = sshll.u32 [#allocation5], 4
      %s116 = int_to_ptr.vmem [resolvable:$true] %s115
      %121 = dma.vmem_to_hbm [thread:$0]  %s116, 256, %s3, [#allocation4], 128, 128, 8
    $region21: #{tpu_custom_call.1} parent=1 // pred_fallthru
      _
    // Predicated region
    $region22: #{tpu_custom_call.1} parent=1 // pred_check
      _
    $region23: #{tpu_custom_call.1} parent=1 // pred_check_branch
      %123 = sbr.rel (0) target = $region25
    $region24: #{tpu_custom_call.1} parent=1 // pred_region
      %124 = dma.done [#allocation4], 256
    $region25: #{tpu_custom_call.1} parent=1 // pred_fallthru
      _
    %125 = vsyncpa [#allocation3], 1
    %126 = vsyncpa [#allocation4], 1

</llo_original>
